<compile_context>
chip_gen: v7x
topology: tpu7x:2x2x1
jax: 0.10.0
libtpu: 0.0.40
codegen_flags: <defaults>
</compile_context>

<pallas_src>
import jax
import jax.numpy as jnp
from jax.experimental import pallas as pl
from jax.experimental.pallas import tpu as pltpu

_LANE = 128                     # lane width (last-dim tiling unit)
_SUBLANE = 8                    # sublane width (second-to-last tiling unit)
_TILE_R_MAX = 512               # rows per block (multiple of 8/16/32)
_TILE_L_MAX = 2048              # lanes per block (multiple of 128)
_MIN_BLOCKS = 4                 # >=2 for v7x's 2 TCs, >=4 for pipeline overlap
_VMEM_LIMIT = 32 * 1024 * 1024  # safe on v5e/v6e/v7x


def _round_up(x: int, m: int) -> int:
    return ((x + m - 1) // m) * m


def _copy_kernel(x_ref, o_ref):
    # Straight copy: the chomp was already applied by the input BlockSpec/grid.
    o_ref[...] = x_ref[...]


def _slice_copy_kernel(x_ref, o_ref):
    # Fallback for tiny l_out: slice the kept prefix in-kernel.
    o_ref[...] = x_ref[:, : o_ref.shape[-1]]


def _pick_tiles(rows: int, l_out: int) -> tuple[int, int]:
    """Balanced, lane-aligned tiles with enough blocks for 2-core occupancy."""
    # Balanced lane tiling: split l_out into near-equal 128-multiples instead
    # of "max tile + mostly-masked remainder".
    n_l = pl.cdiv(l_out, _TILE_L_MAX)
    tile_l = min(_TILE_L_MAX, _round_up(pl.cdiv(l_out, n_l), _LANE))
    tile_r = rows if rows <= _TILE_R_MAX else _TILE_R_MAX

    def n_blocks(tr: int, tl: int) -> int:
        return pl.cdiv(rows, tr) * pl.cdiv(l_out, tl)

    # Guarantee >= _MIN_BLOCKS grid steps when the shape allows it, so both
    # v7x TensorCores get work and input/output DMAs can overlap.
    while n_blocks(tile_r, tile_l) < _MIN_BLOCKS:
        if tile_r >= 2 * _SUBLANE:          # prefer row splits: lanes stay long
            tile_r = _round_up(pl.cdiv(tile_r, 2), _SUBLANE)
        elif tile_l >= 2 * _LANE:
            tile_l = _round_up(pl.cdiv(tile_l, 2), _LANE)
        else:
            break
    return tile_r, tile_l


def chomp1d(x: jax.Array, chomp_size: int) -> jax.Array:
    """Pallas equivalent of Chomp1d.forward: x[:, :, :-chomp_size]."""
    assert chomp_size > 0, "chomp_size must be positive (matches x[:, :, :-k])"
    n, c, l = x.shape
    l_out = l - chomp_size
    assert l_out > 0, "chomp_size must be smaller than the length dimension"

    rows = n * c
    xf = x.reshape(rows, l)  # free reshape for contiguous (N, C, L)
    itemsize = jnp.dtype(x.dtype).itemsize

    if l_out >= _LANE:
        # Lane-aligned tiling of the kept prefix: the length grid only covers
        # ceil(l_out / tile_l) tiles, so the chomped tail is (up to 128-lane
        # alignment) never read from HBM and the output stays lane-dense.
        tile_r, tile_l = _pick_tiles(rows, l_out)
        grid = (pl.cdiv(rows, tile_r), pl.cdiv(l_out, tile_l))
        cost = pl.CostEstimate(
            flops=0, transcendentals=0,
            bytes_accessed=2 * rows * l_out * itemsize)
        out2d = pl.pallas_call(
            _copy_kernel,
            out_shape=jax.ShapeDtypeStruct((rows, l_out), x.dtype),
            grid=grid,
            in_specs=[pl.BlockSpec((tile_r, tile_l), lambda i, j: (i, j))],
            out_specs=pl.BlockSpec((tile_r, tile_l), lambda i, j: (i, j)),
            compiler_params=pltpu.CompilerParams(
                dimension_semantics=("parallel", "parallel"),
                vmem_limit_bytes=_VMEM_LIMIT,
            ),
            cost_estimate=cost,
        )(xf)
    else:
        # l_out < 128: output block equals the full (tiny) output width.  Only
        # read the first 128-lane group of the input (or the whole row if
        # l < 128), so a large chomped tail is still not DMA'd.
        tile_r = rows if rows <= _TILE_R_MAX else _TILE_R_MAX
        in_tile_l = l if l < _LANE else _LANE
        grid_r = pl.cdiv(rows, tile_r)
        cost = pl.CostEstimate(
            flops=0, transcendentals=0,
            bytes_accessed=rows * (in_tile_l + l_out) * itemsize)
        out2d = pl.pallas_call(
            _slice_copy_kernel,
            out_shape=jax.ShapeDtypeStruct((rows, l_out), x.dtype),
            grid=(grid_r,),
            in_specs=[pl.BlockSpec((tile_r, in_tile_l), lambda i: (i, 0))],
            out_specs=pl.BlockSpec((tile_r, l_out), lambda i: (i, 0)),
            compiler_params=pltpu.CompilerParams(
                dimension_semantics=("parallel",),
                vmem_limit_bytes=_VMEM_LIMIT,
            ),
            cost_estimate=cost,
        )(xf)

    return out2d.reshape(n, c, l_out)


if __name__ == "__main__":
    key = jax.random.PRNGKey(0)

    # (N, C, L) + chomp_size:
    #  * tiny fallback (l < 128)
    #  * fallback with l >= 128 (only the 128-lane prefix is read)
    #  * lane-tiled, l_out % 128 != 0, small chomp (masked boundary block)
    #  * lane-tiled, forces the occupancy split to grid=(2, 2)
    #  * lane-tiled, balanced multi-tile length axis (grid_l = 4)
    cases = [
        ((2, 4, 16), 3),
        ((2, 4, 200), 150),
        ((2, 4, 260), 7),
        ((2, 8, 384), 5),
        ((1, 6, 2600), 50),
    ]

    for shape, chomp in cases:
        key, sub = jax.random.split(key)
        x = jax.random.normal(sub, shape, dtype=jnp.float32)

        y = chomp1d(x, chomp)
        jax.block_until_ready(y)

        y_ref = x[:, :, :-chomp]  # same semantics as PyTorch
        assert y.shape == y_ref.shape, (y.shape, y_ref.shape)
        assert y.dtype == x.dtype
        assert bool(jnp.array_equal(y, y_ref)), f"mismatch for shape={shape}"

    print("KERNEL_OK")
</pallas_src>

<mosaic_0001>
module attributes {stable_mosaic.version = 11 : i64} {
  func.func @_slice_copy_kernel(%arg0: i32, %arg1: memref<8x16xf32, #tpu.memory_space<vmem>>, %arg2: memref<8x13xf32, #tpu.memory_space<vmem>>) attributes {dimension_semantics = [#tpu.dimension_semantics<parallel>], iteration_bounds = array<i64: 1>, scalar_prefetch = 0 : i64, scratch_operands = 0 : i64, tpu.core_type = #tpu.core_type<tc>, window_params = [{transform_indices = @transform_0, window_bounds = array<i64: 8, 16>}, {transform_indices = @transform_1, window_bounds = array<i64: 8, 13>}]} {
    %c0 = arith.constant 0 : index
    %c0_0 = arith.constant 0 : index
    %0 = vector.load %arg1[%c0, %c0_0] : memref<8x16xf32, #tpu.memory_space<vmem>>, vector<8x13xf32>
    %c0_1 = arith.constant 0 : index
    %c0_2 = arith.constant 0 : index
    %1 = vector.load %arg2[%c0_1, %c0_2] : memref<8x13xf32, #tpu.memory_space<vmem>>, vector<8x13xf32>
    tpu.vector_store %arg2[%c0_1, %c0_2], %0 {strides = array<i32>} : memref<8x13xf32, #tpu.memory_space<vmem>>, vector<8x13xf32>,
    return
  }
  func.func @transform_0(%arg0: i32) -> (i32, i32) {
    %c0_i32 = arith.constant 0 : i32
    %c0_i32_0 = arith.constant 0 : i32
    return %arg0, %c0_i32 : i32, i32
  }
  func.func @transform_1(%arg0: i32) -> (i32, i32) {
    %c0_i32 = arith.constant 0 : i32
    %c0_i32_0 = arith.constant 0 : i32
    return %arg0, %c0_i32 : i32, i32
  }
}

</mosaic_0001>

<llo_original>
// kernel: tpu_custom_call.1
$region0: #{tpu_custom_call.1}
  #allocation0 [shape = 'u32[]', space=smem, size = 0x4, offset = 0x4, fixed_abs, tag = 'smem constant byte address 0x4 - core index']
  #allocation1 [shape = 'u32[144,128]{1,0:T(1,128)}', space=vmem, size = 0x12000, scoped, tag = 'internal scratch']
  %s0 = inlined_call_operand.hbm [shape: f32[8,16], index: 0, kind: input, shape index: {}]
  %s1 = inlined_call_operand.hbm [shape: f32[8,13], index: 1, kind: output, shape index: {}]
  %s2 = sld [smem:[#allocation0]]
  $region18: #{tpu_custom_call.1} parent=0
    _
  %s4 = ssub.s32 1, %s2
  %s5 = scalar_select 0, %s4, %s2
  $region1: #{tpu_custom_call.1} parent=0
    #allocation2 [shape = 'u8[4096]{0}', space=vmem, size = 0x1000, scoped, tag = 'input window, operand 0, single buffered']
    #allocation3 [shape = 's32[1]{0}', space=sflag, size = 0x4, scoped, tag = 'scoped memory for tpu_custom_call.1']
    #allocation4 [shape = 's32[1]{0}', space=sflag, size = 0x4, scoped, tag = 'scoped memory for tpu_custom_call.1']
    #allocation5 [shape = 'u8[4096]{0}', space=vmem, size = 0x1000, scoped, tag = 'output window, operand 0, single buffered']
    %6 = vsyncpa [#allocation3], 0
    %7 = vsyncpa [#allocation4], 0
    // Predicated region
    $region2: #{tpu_custom_call.1} parent=1 // pred_check
      _
    $region3: #{tpu_custom_call.1} parent=1 // pred_check_branch
      %9 = sbr.rel (0) target = $region5
    $region4: #{tpu_custom_call.1} parent=1 // pred_region
      %s11 = ssub.s32 128, 128
      %12 = vsyncadd [#allocation3], %s11
      %s14 = sshll.u32 [#allocation2], 4
      %s15 = int_to_ptr.vmem [resolvable:$true] %s14
      %17 = dma.hbm_to_vmem [thread:$0]  %s0, 128, %s15, [#allocation3]
    $region5: #{tpu_custom_call.1} parent=1 // pred_fallthru
      _
    // Predicated region
    $region6: #{tpu_custom_call.1} parent=1 // pred_check
      _
    $region7: #{tpu_custom_call.1} parent=1 // pred_check_branch
      %19 = sbr.rel (0) target = $region9
    $region8: #{tpu_custom_call.1} parent=1 // pred_region
      %20 = dma.done [#allocation3], 128
    $region9: #{tpu_custom_call.1} parent=1 // pred_fallthru
      _
    %v21 = vld [vmem:[#allocation2] sm:$0xff]
    %vm22 = vcmask 105472
    %23 = vst.msk [vmem:[#allocation5] sm:$0xff] %vm22, %v21
    // Predicated region
    $region10: #{tpu_custom_call.1} parent=1 // pred_check
      _
    $region11: #{tpu_custom_call.1} parent=1 // pred_check_branch
      %25 = sbr.rel (0) target = $region13
    $region12: #{tpu_custom_call.1} parent=1 // pred_region
      %s27 = ssub.s32 128, 128
      %28 = vsyncadd [#allocation4], %s27
      %s30 = sshll.u32 [#allocation5], 4
      %s31 = int_to_ptr.vmem [resolvable:$true] %s30
      %33 = dma.vmem_to_hbm [thread:$0]  %s31, 128, %s1, [#allocation4]
    $region13: #{tpu_custom_call.1} parent=1 // pred_fallthru
      _
    // Predicated region
    $region14: #{tpu_custom_call.1} parent=1 // pred_check
      _
    $region15: #{tpu_custom_call.1} parent=1 // pred_check_branch
      %35 = sbr.rel (0) target = $region17
    $region16: #{tpu_custom_call.1} parent=1 // pred_region
      %36 = dma.done [#allocation4], 128
    $region17: #{tpu_custom_call.1} parent=1 // pred_fallthru
      _
    %37 = vsyncpa [#allocation3], 1
    %38 = vsyncpa [#allocation4], 1

</llo_original>
